<compile_context>
chip_gen: v7x
topology: tpu7x:2x2x1
jax: 0.10.0
libtpu: 0.0.40
codegen_flags: <defaults>
</compile_context>

<pallas_src>
import jax
import jax.numpy as jnp
from jax.experimental import pallas as pl
from jax.experimental.pallas import tpu as pltpu


def _net_kernel(x_ref, w1_ref, w2_ref, b2_ref, o_ref, h_ref):
    # fc1 once per batch tile (first vocab tile only); reuse h across j.
    @pl.when(pl.program_id(1) == 0)
    def _():
        xb = x_ref[...].astype(w1_ref.dtype)          # in-kernel f32 -> bf16 cast
        h_ref[...] = jnp.dot(xb, w1_ref[...],
                             preferred_element_type=jnp.float32)   # [TB, E] f32

    # fc2 column tile: [TB, E] @ [E, TN] -> [TB, TN], f32 MXU accumulate.
    y = jnp.dot(h_ref[...].astype(w2_ref.dtype), w2_ref[...],
                preferred_element_type=jnp.float32)
    # Folded bias (b2' = b1 @ W2 + b2) add in f32; lane-dense f32 store.
    o_ref[...] = (y + b2_ref[...]).astype(o_ref.dtype)


def _pick_tile(dim, preferred):
    """Largest legal tile <= preferred that divides dim (falls back to dim)."""
    for t in (preferred, 256, 128):
        if t <= dim and dim % t == 0:
            return t
    return dim


def prepare_params(w1_t, b1, w2_t, b2, *, compute_dtype=jnp.bfloat16):
    """One-time parameter prep (hoisted out of the per-call hot path).

    w1_t : [V, E]  fc1 weight, pre-transposed (torch stores [E, V])
    b1   : [1, E]  fc1 bias
    w2_t : [E, V]  fc2 weight, pre-transposed (torch stores [V, E])
    b2   : [1, V]  fc2 bias
    returns (w1c bf16 [V,E], w2c bf16 [E,V], b2p f32 [1,V])
    """
    b2p = (jnp.dot(b1.astype(jnp.float32), w2_t.astype(jnp.float32),
                   precision=jax.lax.Precision.HIGHEST)
           + b2.astype(jnp.float32))                    # folded bias, f32 [1, V]
    return (w1_t.astype(compute_dtype),
            w2_t.astype(compute_dtype),
            b2p)


def net_forward(x, w1c, w2c, b2p, *, block_b=128, block_n=512):
    """Forward pass of Net: fc2(fc1(x)).  x: [B, V] f32 -> [B, V] f32."""
    B, V = x.shape
    Vw, E = w1c.shape
    assert Vw == V and w2c.shape == (E, V) and b2p.shape == (1, V)

    tb = _pick_tile(B, block_b)      # batch tile (MXU rows)
    tn = _pick_tile(V, block_n)      # vocab/output tile (lane-dense, mult of 128)
    grid = (B // tb, V // tn)

    wsz = jnp.dtype(w1c.dtype).itemsize
    # x tile + W1 are resident (constant block index) -> counted once.
    # W2 tile, bias tile, output tile are double-buffered -> counted x2.
    tile_bytes = (tb * V * 4 + V * E * wsz + tb * E * 4          # x, W1, h scratch
                  + 2 * (E * tn * wsz + tn * 4 + tb * tn * 4))   # W2, b2', out
    vmem_limit = int(min(max(tile_bytes + (4 << 20), 16 << 20), 48 << 20))

    cost = pl.CostEstimate(
        flops=2 * B * V * E + 2 * B * E * V,                      # fc1 once + fc2
        transcendentals=0,
        bytes_accessed=int(x.size * 4 + w1c.size * wsz + w2c.size * wsz
                           + b2p.size * 4 + B * V * 4),
    )

    return pl.pallas_call(
        _net_kernel,
        out_shape=jax.ShapeDtypeStruct((B, V), jnp.float32),
        grid=grid,
        in_specs=[
            pl.BlockSpec((tb, V), lambda i, j: (i, 0)),   # x batch tile (resident over j)
            pl.BlockSpec((V, E), lambda i, j: (0, 0)),    # W1 (resident)
            pl.BlockSpec((E, tn), lambda i, j: (0, j)),   # W2 column tile
            pl.BlockSpec((1, tn), lambda i, j: (0, j)),   # folded bias tile
        ],
        out_specs=pl.BlockSpec((tb, tn), lambda i, j: (i, j)),
        scratch_shapes=[pltpu.VMEM((tb, E), jnp.float32)],  # h = fc1 activation
        compiler_params=pltpu.CompilerParams(
            dimension_semantics=("parallel", "arbitrary"),
            vmem_limit_bytes=vmem_limit,
        ),
        cost_estimate=cost,
    )(x, w1c, w2c, b2p)


def init_params(key, vocab_size, embedding_dim):
    """Deterministic init mimicking PyTorch nn.Linear (uniform +-1/sqrt(fan_in))."""
    k1, k2, k3, k4 = jax.random.split(key, 4)
    bound1 = 1.0 / jnp.sqrt(jnp.float32(vocab_size))
    bound2 = 1.0 / jnp.sqrt(jnp.float32(embedding_dim))
    # fc1.weight: [E, V] in torch; stored transposed [V, E] for the kernel.
    w1_t = jax.random.uniform(k1, (vocab_size, embedding_dim), jnp.float32,
                              -bound1, bound1)
    b1 = jax.random.uniform(k2, (1, embedding_dim), jnp.float32, -bound1, bound1)
    # fc2.weight: [V, E] in torch; stored transposed [E, V].
    w2_t = jax.random.uniform(k3, (embedding_dim, vocab_size), jnp.float32,
                              -bound2, bound2)
    b2 = jax.random.uniform(k4, (1, vocab_size), jnp.float32, -bound2, bound2)
    return w1_t, b1, w2_t, b2


if __name__ == "__main__":
    vocab_size = 512      # small synthetic vocab (multiple of 128 -> lane-dense tiles)
    embedding_dim = 32    # from the module
    batch = 256           # two 128-row batch tiles -> both v7x TensorCores busy

    key = jax.random.PRNGKey(0)
    kx, kp = jax.random.split(key)
    x = jax.random.normal(kx, (batch, vocab_size), jnp.float32)
    w1_t, b1, w2_t, b2 = init_params(kp, vocab_size, embedding_dim)

    # One-time parameter prep (bf16 casts + bias fold), then the kernel call.
    w1c, w2c, b2p = prepare_params(w1_t, b1, w2_t, b2)
    out = net_forward(x, w1c, w2c, b2p)
    out = jax.block_until_ready(out)

    # Reference in plain JAX mirroring the kernel's bf16-operand / f32-accumulate path.
    hp = jax.lax.Precision.HIGHEST
    xr = x.astype(jnp.bfloat16).astype(jnp.float32)
    w1r = w1_t.astype(jnp.bfloat16).astype(jnp.float32)
    w2r = w2_t.astype(jnp.bfloat16).astype(jnp.float32)
    h_ref = jnp.dot(xr, w1r, precision=hp).astype(jnp.bfloat16).astype(jnp.float32)
    b2p_ref = jnp.dot(b1, w2_t, precision=hp) + b2
    ref = jnp.dot(h_ref, w2r, precision=hp) + b2p_ref

    assert out.shape == (batch, vocab_size)
    assert out.dtype == jnp.float32
    assert jnp.allclose(out, ref, atol=2e-2, rtol=2e-2), float(
        jnp.max(jnp.abs(out - ref)))

    print("KERNEL_OK")
</pallas_src>

<mosaic_0001>
module attributes {stable_mosaic.version = 11 : i64} {
  func.func @_net_kernel(%arg0: i32, %arg1: i32, %arg2: memref<128x512xf32, #tpu.memory_space<vmem>>, %arg3: memref<512x32xbf16, #tpu.memory_space<vmem>>, %arg4: memref<32x512xbf16, #tpu.memory_space<vmem>>, %arg5: memref<1x512xf32, #tpu.memory_space<vmem>>, %arg6: memref<128x512xf32, #tpu.memory_space<vmem>>, %arg7: memref<128x32xf32, #tpu.memory_space<vmem>>) attributes {dimension_semantics = [#tpu.dimension_semantics<parallel>, #tpu.dimension_semantics<arbitrary>], iteration_bounds = array<i64: 2, 1>, scalar_prefetch = 0 : i64, scratch_operands = 1 : i64, tpu.core_type = #tpu.core_type<tc>, window_params = [{transform_indices = @transform_0, window_bounds = array<i64: 128, 512>}, {pipeline_mode = #tpu.pipeline_mode<synchronous>, transform_indices = @transform_1, window_bounds = array<i64: 512, 32>}, {transform_indices = @transform_2, window_bounds = array<i64: 32, 512>}, {transform_indices = @transform_3, window_bounds = array<i64: 1, 512>}, {transform_indices = @transform_4, window_bounds = array<i64: 128, 512>}]} {
    %c0_i32 = arith.constant 0 : i32
    %0 = arith.cmpi eq, %arg1, %c0_i32 : i32
    %1 = arith.extui %0 : i1 to i32
    %c0_i32_0 = arith.constant 0 : i32
    %2 = arith.cmpi ne, %1, %c0_i32_0 : i32
    scf.if %2 {
      %c0_8 = arith.constant 0 : index
      %c0_9 = arith.constant 0 : index
      %11 = vector.load %arg2[%c0_8, %c0_9] : memref<128x512xf32, #tpu.memory_space<vmem>>, vector<128x512xf32>
      %12 = arith.truncf %11 : vector<128x512xf32> to vector<128x512xbf16>
      %c0_10 = arith.constant 0 : index
      %c0_11 = arith.constant 0 : index
      %13 = vector.load %arg3[%c0_10, %c0_11] : memref<512x32xbf16, #tpu.memory_space<vmem>>, vector<512x32xbf16>
      %cst_12 = arith.constant dense<0.000000e+00> : vector<128x32xf32>
      %14 = tpu.matmul %12, %13, %cst_12 {dimension_numbers = #tpu.dot_dimension_numbers<[1], [0], [0], [1], [0, 0, 1, 1], [], []>} : vector<128x512xbf16>, vector<512x32xbf16>, vector<128x32xf32> -> vector<128x32xf32>
      %c0_13 = arith.constant 0 : index
      %c0_14 = arith.constant 0 : index
      %15 = vector.load %arg7[%c0_13, %c0_14] : memref<128x32xf32, #tpu.memory_space<vmem>>, vector<128x32xf32>
      tpu.vector_store %arg7[%c0_13, %c0_14], %14 {strides = array<i32>} : memref<128x32xf32, #tpu.memory_space<vmem>>, vector<128x32xf32>,
    } else {
    }
    %c0 = arith.constant 0 : index
    %c0_1 = arith.constant 0 : index
    %3 = vector.load %arg7[%c0, %c0_1] : memref<128x32xf32, #tpu.memory_space<vmem>>, vector<128x32xf32>
    %4 = arith.truncf %3 : vector<128x32xf32> to vector<128x32xbf16>
    %c0_2 = arith.constant 0 : index
    %c0_3 = arith.constant 0 : index
    %5 = vector.load %arg4[%c0_2, %c0_3] : memref<32x512xbf16, #tpu.memory_space<vmem>>, vector<32x512xbf16>
    %cst = arith.constant dense<0.000000e+00> : vector<128x512xf32>
    %6 = tpu.matmul %4, %5, %cst {dimension_numbers = #tpu.dot_dimension_numbers<[1], [0], [0], [1], [0, 0, 1, 1], [], []>} : vector<128x32xbf16>, vector<32x512xbf16>, vector<128x512xf32> -> vector<128x512xf32>
    %c0_4 = arith.constant 0 : index
    %c0_5 = arith.constant 0 : index
    %7 = vector.load %arg5[%c0_4, %c0_5] : memref<1x512xf32, #tpu.memory_space<vmem>>, vector<1x512xf32>
    %8 = vector.broadcast %7 : vector<1x512xf32> to vector<128x512xf32>
    %9 = arith.addf %6, %8 : vector<128x512xf32>
    %c0_6 = arith.constant 0 : index
    %c0_7 = arith.constant 0 : index
    %10 = vector.load %arg6[%c0_6, %c0_7] : memref<128x512xf32, #tpu.memory_space<vmem>>, vector<128x512xf32>
    tpu.vector_store %arg6[%c0_6, %c0_7], %9 {strides = array<i32>} : memref<128x512xf32, #tpu.memory_space<vmem>>, vector<128x512xf32>,
    return
  }
  func.func @transform_0(%arg0: i32, %arg1: i32) -> (i32, i32) {
    %c0_i32 = arith.constant 0 : i32
    %c0_i32_0 = arith.constant 0 : i32
    return %arg0, %c0_i32 : i32, i32
  }
  func.func @transform_1(%arg0: i32, %arg1: i32) -> (i32, i32) {
    %c0_i32 = arith.constant 0 : i32
    %c0_i32_0 = arith.constant 0 : i32
    %c0_i32_1 = arith.constant 0 : i32
    return %c0_i32, %c0_i32_0 : i32, i32
  }
  func.func @transform_2(%arg0: i32, %arg1: i32) -> (i32, i32) {
    %c0_i32 = arith.constant 0 : i32
    %c0_i32_0 = arith.constant 0 : i32
    return %c0_i32, %arg1 : i32, i32
  }
  func.func @transform_3(%arg0: i32, %arg1: i32) -> (i32, i32) {
    %c0_i32 = arith.constant 0 : i32
    %c0_i32_0 = arith.constant 0 : i32
    return %c0_i32, %arg1 : i32, i32
  }
  func.func @transform_4(%arg0: i32, %arg1: i32) -> (i32, i32) {
    %c0_i32 = arith.constant 0 : i32
    return %arg0, %arg1 : i32, i32
  }
}

</mosaic_0001>

<llo_original>
// kernel: tpu_custom_call.1
$region0: #{tpu_custom_call.1}
  #allocation0 [shape = 'u32[]', space=smem, size = 0x4, offset = 0x4, fixed_abs, tag = 'smem constant byte address 0x4 - core index']
  #allocation1 [shape = 'u32[144,128]{1,0:T(1,128)}', space=vmem, size = 0x12000, scoped, tag = 'internal scratch']
  #allocation2 [shape = 'f32[128,32]{1,0:T(8,128)}', space=vmem, size = 0x10000, scoped, tag = 'scratch operand']
  %s0 = inlined_call_operand.hbm [shape: f32[256,512], index: 0, kind: input, shape index: {}]
  %s1 = inlined_call_operand.vmem [shape: bf16[512,32], index: 1, kind: input, shape index: {}]
  %s2 = inlined_call_operand.vmem [shape: bf16[32,512], index: 2, kind: input, shape index: {}]
  %s3 = inlined_call_operand.vmem [shape: f32[1,512], index: 3, kind: input, shape index: {}]
  %s4 = inlined_call_operand.hbm [shape: f32[256,512], index: 4, kind: output, shape index: {}]
  %s5 = sld [smem:[#allocation0]]
  $region57: #{tpu_custom_call.1} parent=0
    _
  %s7 = ssub.s32 1, %s5
  %s8 = scalar_select 0, %s7, %s5
  $region1: #{tpu_custom_call.1} parent=0
    #allocation3 [shape = 'u8[524288]{0}', space=vmem, size = 0x80000, scoped, tag = 'input window, operand 0']
    #allocation4 [shape = 's32[2]{0}', space=sflag, size = 0x8, scoped, tag = 'scoped memory for tpu_custom_call.1']
    #allocation5 [shape = 's32[2]{0}', space=sflag, size = 0x8, scoped, tag = 'scoped memory for tpu_custom_call.1']
    #allocation6 [shape = 'u8[524288]{0}', space=vmem, size = 0x80000, scoped, tag = 'output window, operand 0']
    %9 = vsyncpa [#allocation4], 0
    %s10 = scalar_lea.sflag [#allocation4], 1
    %11 = vsyncpa %s10, 0
    %12 = vsyncpa [#allocation5], 0
    %s13 = scalar_lea.sflag [#allocation5], 1
    %14 = vsyncpa %s13, 0
    loop: start=0, step=1, limit=4
    $region2: #{tpu_custom_call.1} parent=1 // loop_pre_header
      _
    $region3: #{tpu_custom_call.1} parent=1 // loop_header
      %s16 = sphi 0, %s20
      %p17 = scmp.ge.s32.totalorder %s16, 4
      %s23 = sphi 0, %s35
      %s24 = sphi 0, %s31
      %s25 = sphi 0, %s23
      %s26 = sphi 0, %s24
      %s27 = sphi 0, %s25
      %s28 = sphi 0, %s26
      %s38 = sphi 0, %s40
      %s41 = sphi 0, %s38
      %s42 = sphi 0, %s41
      %s58 = sphi 0, %s42
      %s62 = sphi 0, %s62
      %s64 = sphi 0, %s62
      %s65 = sphi 0, %s64
      %s79 = sphi 0, %s65
      %s85 = sphi 0, %s87
      %s88 = sphi 0, %s85
      %s89 = sphi 0, %s88
      %s105 = sphi 0, %s89
      %s111 = sphi 0, %s113
      %s114 = sphi 0, %s111
      %s115 = sphi 0, %s114
      %s131 = sphi 0, %s115
      %s139 = sphi 0, %s141
      %s142 = sphi 0, %s139
      %s143 = sphi 0, %s142
      %s159 = sphi 0, %s143
    $region4: #{tpu_custom_call.1} parent=1 // loop_header_branch
      %19 = sbr.rel (%p17) target = $region8
    $region5: #{tpu_custom_call.1} parent=1 // loop_body
      %s21 = ssub.s32 %s16, 1
      %s22 = ssub.s32 %s16, 2
      %s29 = sadd.s32 1, %s24
      %p30 = scmp.ge.s32.totalorder %s29, 1
      %s31 = scalar_select %p30, 0, %s29
      %s32 = sadd.s32 1, %s23
      %s33 = scalar_select %p30, %s32, %s23
      %p34 = scmp.ge.s32.totalorder %s33, 2
      %s35 = scalar_select %p34, 0, %s33
      %s36 = ssub.s32 %s23, %s35
      %p37 = scmp.eq.s32.totalorder %s36, 0
      %s39 = sadd.s32 %s38, 1
      %s40 = scalar_select %p37, %s38, %s39
      %p43 = pneg %p37
      %p44 = scmp.eq.s32.totalorder %s16, 1
      %p45 = por %p43, %p44
      %p46 = scmp.ne.s32.totalorder %s38, %s41
      %p47 = scmp.eq.s32.totalorder %s16, 0
      %p48 = por %p46, %p47
      %p49 = scmp.ne.s32.totalorder %s38, %s41
      %p50 = scmp.eq.s32.totalorder %s21, 1
      %p51 = por %p49, %p50
      %p52 = scmp.ne.s32.totalorder %s41, %s42
      %p53 = scmp.eq.s32.totalorder %s21, 0
      %p54 = por %p52, %p53
      %p55 = scmp.ne.s32.totalorder %s41, %s42
      %p56 = scmp.eq.s32.totalorder %s22, 1
      %p57 = por %p55, %p56
      %p59 = scmp.ne.s32.totalorder %s42, %s58
      %p60 = scmp.eq.s32.totalorder %s22, 0
      %p61 = por %p59, %p60
      %s63 = sadd.s32 %s62, 1
      %p66 = scmp.eq.s32.totalorder %s16, 1
      %p67 = scmp.ne.s32.totalorder %s62, %s64
      %p68 = scmp.eq.s32.totalorder %s16, 0
      %p69 = por %p67, %p68
      %p70 = scmp.ne.s32.totalorder %s62, %s64
      %p71 = scmp.eq.s32.totalorder %s21, 1
      %p72 = por %p70, %p71
      %p73 = scmp.ne.s32.totalorder %s64, %s65
      %p74 = scmp.eq.s32.totalorder %s21, 0
      %p75 = por %p73, %p74
      %p76 = scmp.ne.s32.totalorder %s64, %s65
      %p77 = scmp.eq.s32.totalorder %s22, 1
      %p78 = por %p76, %p77
      %p80 = scmp.ne.s32.totalorder %s65, %s79
      %p81 = scmp.eq.s32.totalorder %s22, 0
      %p82 = por %p80, %p81
      %s83 = ssub.s32 %s24, %s31
      %p84 = scmp.eq.s32.totalorder %s83, 0
      %s86 = sadd.s32 %s85, 1
      %s87 = scalar_select %p84, %s85, %s86
      %p90 = pneg %p84
      %p91 = scmp.eq.s32.totalorder %s16, 1
      %p92 = por %p90, %p91
      %p93 = scmp.ne.s32.totalorder %s85, %s88
      %p94 = scmp.eq.s32.totalorder %s16, 0
      %p95 = por %p93, %p94
      %p96 = scmp.ne.s32.totalorder %s85, %s88
      %p97 = scmp.eq.s32.totalorder %s21, 1
      %p98 = por %p96, %p97
      %p99 = scmp.ne.s32.totalorder %s88, %s89
      %p100 = scmp.eq.s32.totalorder %s21, 0
      %p101 = por %p99, %p100
      %p102 = scmp.ne.s32.totalorder %s88, %s89
      %p103 = scmp.eq.s32.totalorder %s22, 1
      %p104 = por %p102, %p103
      %p106 = scmp.ne.s32.totalorder %s89, %s105
      %p107 = scmp.eq.s32.totalorder %s22, 0
      %p108 = por %p106, %p107
      %s109 = ssub.s32 %s24, %s31
      %p110 = scmp.eq.s32.totalorder %s109, 0
      %s112 = sadd.s32 %s111, 1
      %s113 = scalar_select %p110, %s111, %s112
      %p116 = pneg %p110
      %p117 = scmp.eq.s32.totalorder %s16, 1
      %p118 = por %p116, %p117
      %p119 = scmp.ne.s32.totalorder %s111, %s114
      %p120 = scmp.eq.s32.totalorder %s16, 0
      %p121 = por %p119, %p120
      %p122 = scmp.ne.s32.totalorder %s111, %s114
      %p123 = scmp.eq.s32.totalorder %s21, 1
      %p124 = por %p122, %p123
      %p125 = scmp.ne.s32.totalorder %s114, %s115
      %p126 = scmp.eq.s32.totalorder %s21, 0
      %p127 = por %p125, %p126
      %p128 = scmp.ne.s32.totalorder %s114, %s115
      %p129 = scmp.eq.s32.totalorder %s22, 1
      %p130 = por %p128, %p129
      %p132 = scmp.ne.s32.totalorder %s115, %s131
      %p133 = scmp.eq.s32.totalorder %s22, 0
      %p134 = por %p132, %p133
      %s135 = ssub.s32 %s23, %s35
      %s136 = ssub.s32 %s24, %s31
      %s137 = sor.u32 %s135, %s136
      %p138 = scmp.eq.s32.totalorder %s137, 0
      %s140 = sadd.s32 %s139, 1
      %s141 = scalar_select %p138, %s139, %s140
      %p144 = pneg %p138
      %p145 = scmp.eq.s32.totalorder %s16, 1
      %p146 = por %p144, %p145
      %p147 = scmp.ne.s32.totalorder %s139, %s142
      %p148 = scmp.eq.s32.totalorder %s16, 0
      %p149 = por %p147, %p148
      %p150 = scmp.ne.s32.totalorder %s139, %s142
      %p151 = scmp.eq.s32.totalorder %s21, 1
      %p152 = por %p150, %p151
      %p153 = scmp.ne.s32.totalorder %s142, %s143
      %p154 = scmp.eq.s32.totalorder %s21, 0
      %p155 = por %p153, %p154
      %p156 = scmp.ne.s32.totalorder %s142, %s143
      %p157 = scmp.eq.s32.totalorder %s22, 1
      %p158 = por %p156, %p157
      %p160 = scmp.ne.s32.totalorder %s143, %s159
      %p161 = scmp.eq.s32.totalorder %s22, 0
      %p162 = por %p160, %p161
      %p163 = scmp.le.s32.totalorder 1, %s16
      %p164 = scmp.lt.s32.totalorder %s16, 3
      %p165 = pnand %p163, %p164
      %p166 = pneg %p165
      // Predicated region
      $region9: #{tpu_custom_call.1} parent=5 // pred_check
        _
      $region10: #{tpu_custom_call.1} parent=5 // pred_check_branch
        %168 = sbr.rel (%p165) target = $region12
      $region11: #{tpu_custom_call.1} parent=5 // pred_region
        %s169 = ssub.s32 %s16, 1
        // Predicated region
        $region13: #{tpu_custom_call.1} parent=11 // pred_check
          %p170 = pneg %p75
        $region14: #{tpu_custom_call.1} parent=11 // pred_check_branch
          %172 = sbr.rel (%p170) target = $region16
        $region15: #{tpu_custom_call.1} parent=11 // pred_region
          _
        $region16: #{tpu_custom_call.1} parent=11 // pred_fallthru
          _
        // Predicated region
        $region17: #{tpu_custom_call.1} parent=11 // pred_check
          %p173 = pneg %p101
        $region18: #{tpu_custom_call.1} parent=11 // pred_check_branch
          %175 = sbr.rel (%p173) target = $region20
        $region19: #{tpu_custom_call.1} parent=11 // pred_region
          %s176 = smul.u32 4, %s26
          %p177 = scmp.lt.s32.totalorder %s176, 3
          %s178 = scalar_select %p177, %s176, 3
          %s179 = smul.addr %s178, 4
          %s180 = scalar_lea.vmem %s2, %s179
          %s181 = smul.u32 4, %s26
        $region20: #{tpu_custom_call.1} parent=11 // pred_fallthru
          _
        // Predicated region
        $region21: #{tpu_custom_call.1} parent=11 // pred_check
          %p182 = pneg %p127
        $region22: #{tpu_custom_call.1} parent=11 // pred_check_branch
          %184 = sbr.rel (%p182) target = $region24
        $region23: #{tpu_custom_call.1} parent=11 // pred_region
          %s185 = smul.u32 4, %s26
          %p186 = scmp.lt.s32.totalorder %s185, 3
          %s187 = scalar_select %p186, %s185, 3
          %s188 = scalar_lea.vmem %s3, %s187
          %s189 = smul.u32 4, %s26
        $region24: #{tpu_custom_call.1} parent=11 // pred_fallthru
          _
      $region12: #{tpu_custom_call.1} parent=5 // pred_fallthru
        _
      %p190 = scmp.lt.s32.totalorder %s16, 2
      // Predicated region
      $region25: #{tpu_custom_call.1} parent=5 // pred_check
        %p191 = pneg %p190
      $region26: #{tpu_custom_call.1} parent=5 // pred_check_branch
        %193 = sbr.rel (%p191) target = $region28
      $region27: #{tpu_custom_call.1} parent=5 // pred_region
        // Predicated region
        $region29: #{tpu_custom_call.1} parent=27 // pred_check
          %p194 = pneg %p48
        $region30: #{tpu_custom_call.1} parent=27 // pred_check_branch
          %196 = sbr.rel (%p194) target = $region32
        $region31: #{tpu_custom_call.1} parent=27 // pred_region
          %s197 = sand.u32 %s38, 1
          %s198 = scalar_lea.sflag [#allocation4], %s197
          %s199 = sand.u32 %s38, 1
          %s200 = smul.addr %s199, 512
          %s201 = scalar_lea.vmem [#allocation3], %s200
          %s202 = smul.u32 16, %s23
          %s204 = ssub.s32 8192, 8192
          %205 = vsyncadd %s198, %s204
          %s206 = smul.addr %s202, 4
          %s207 = smul.addr %s206, 128
          %s208 = scalar_lea.hbm %s0, %s207
          %s209 = sshll.u32 %s201, 4
          %s210 = int_to_ptr.vmem [resolvable:$true] %s209
          %215 = dma.hbm_to_vmem [thread:$0]  %s208, 8192, %s210, %s198, 512, 512, 32
        $region32: #{tpu_custom_call.1} parent=27 // pred_fallthru
          _
      $region28: #{tpu_custom_call.1} parent=5 // pred_fallthru
        _
      %p216 = scmp.le.s32.totalorder 1, %s16
      %p217 = scmp.lt.s32.totalorder %s16, 3
      %p218 = pnand %p216, %p217
      %p219 = pneg %p218
      // Predicated region
      $region33: #{tpu_custom_call.1} parent=5 // pred_check
        _
      $region34: #{tpu_custom_call.1} parent=5 // pred_check_branch
        %221 = sbr.rel (%p218) target = $region36
      $region35: #{tpu_custom_call.1} parent=5 // pred_region
        %s222 = ssub.s32 %s16, 1
        %s223 = sand.u32 %s41, 1
        %s224 = scalar_lea.sflag [#allocation4], %s223
        %s225 = sand.u32 %s41, 1
        %s226 = smul.addr %s225, 512
        %s227 = scalar_lea.vmem [#allocation3], %s226
        // Predicated region
        $region37: #{tpu_custom_call.1} parent=35 // pred_check
          %p228 = pneg %p54
        $region38: #{tpu_custom_call.1} parent=35 // pred_check_branch
          %230 = sbr.rel (%p228) target = $region40
        $region39: #{tpu_custom_call.1} parent=35 // pred_region
          %231 = dma.done %s224, 8192
        $region40: #{tpu_custom_call.1} parent=35 // pred_fallthru
          _
        %s232 = sand.u32 %s41, 1
        %s233 = scalar_lea.sflag [#allocation4], %s232
        %s234 = sand.u32 %s41, 1
        %s235 = smul.addr %s234, 512
        %s236 = scalar_lea.vmem [#allocation3], %s235
        %p237 = pneg %p54
        %p238 = pneg %p51
        %p239 = pneg %p75
        %p240 = pneg %p72
        %s241 = smul.u32 4, %s26
        %p242 = scmp.lt.s32.totalorder %s241, 3
        %s243 = scalar_select %p242, %s241, 3
        %s244 = smul.addr %s243, 4
        %s245 = scalar_lea.vmem %s2, %s244
        %p246 = pneg %p101
        %p247 = pneg %p98
        %s248 = smul.u32 4, %s26
        %p249 = scmp.lt.s32.totalorder %s248, 3
        %s250 = scalar_select %p249, %s248, 3
        %s251 = scalar_lea.vmem %s3, %s250
        %p252 = pneg %p127
        %p253 = pneg %p124
        %p254 = pneg %p155
        %p255 = pneg %p152
        %s256 = sand.u32 %s142, 1
        %s257 = scalar_lea.sflag [#allocation5], %s256
        %s258 = sand.u32 %s142, 1
        %s259 = smul.addr %s258, 512
        %s260 = scalar_lea.vmem [#allocation6], %s259
        %s261 = smul.u32 16, %s25
        %s262 = smul.u32 4, %s26
        %p263 = scmp.lt.s32.totalorder %s262, 3
        %s264 = scalar_select %p263, %s262, 3
        %s265 = smul.addr %s264, 4
        %s266 = scalar_lea.vmem %s2, %s265
        %s267 = smul.u32 4, %s26
        %s268 = smul.u32 4, %s26
        %p269 = scmp.lt.s32.totalorder %s268, 3
        %s270 = scalar_select %p269, %s268, 3
        %s271 = scalar_lea.vmem %s3, %s270
        %s272 = smul.u32 4, %s26
        %s273 = smul.u32 16, %s25
        %s274 = smul.u32 4, %s26
        %p276 = scmp.eq.s32.totalorder %s26, 0
        // Predicated region
        $region41: #{tpu_custom_call.1} parent=35 // pred_check
          %p277 = pneg %p276
        $region42: #{tpu_custom_call.1} parent=35 // pred_check_branch
          %279 = sbr.rel (%p277) target = $region44
        $region43: #{tpu_custom_call.1} parent=35 // pred_region
          %v280 = vld [vmem:[%s227] sm:$0xff]
          %v281 = vld [vmem:[%s227 + $0x8] sm:$0xff]
          %v282 = vld [vmem:[%s227 + $0x10] sm:$0xff]
          %v283 = vld [vmem:[%s227 + $0x18] sm:$0xff]
          %v284 = vld [vmem:[%s227 + $0x20] sm:$0xff]
          %v285 = vld [vmem:[%s227 + $0x28] sm:$0xff]
          %v286 = vld [vmem:[%s227 + $0x30] sm:$0xff]
          %v287 = vld [vmem:[%s227 + $0x38] sm:$0xff]
          %v288 = vld [vmem:[%s227 + $0x40] sm:$0xff]
          %v289 = vld [vmem:[%s227 + $0x48] sm:$0xff]
          %v290 = vld [vmem:[%s227 + $0x50] sm:$0xff]
          %v291 = vld [vmem:[%s227 + $0x58] sm:$0xff]
          %v292 = vld [vmem:[%s227 + $0x60] sm:$0xff]
          %v293 = vld [vmem:[%s227 + $0x68] sm:$0xff]
          %v294 = vld [vmem:[%s227 + $0x70] sm:$0xff]
          %v295 = vld [vmem:[%s227 + $0x78] sm:$0xff]
          %v296 = vld [vmem:[%s227 + $0x80] sm:$0xff]
          %v297 = vld [vmem:[%s227 + $0x88] sm:$0xff]
          %v298 = vld [vmem:[%s227 + $0x90] sm:$0xff]
          %v299 = vld [vmem:[%s227 + $0x98] sm:$0xff]
          %v300 = vld [vmem:[%s227 + $0xa0] sm:$0xff]
          %v301 = vld [vmem:[%s227 + $0xa8] sm:$0xff]
          %v302 = vld [vmem:[%s227 + $0xb0] sm:$0xff]
          %v303 = vld [vmem:[%s227 + $0xb8] sm:$0xff]
          %v304 = vld [vmem:[%s227 + $0xc0] sm:$0xff]
          %v305 = vld [vmem:[%s227 + $0xc8] sm:$0xff]
          %v306 = vld [vmem:[%s227 + $0xd0] sm:$0xff]
          %v307 = vld [vmem:[%s227 + $0xd8] sm:$0xff]
          %v308 = vld [vmem:[%s227 + $0xe0] sm:$0xff]
          %v309 = vld [vmem:[%s227 + $0xe8] sm:$0xff]
          %v310 = vld [vmem:[%s227 + $0xf0] sm:$0xff]
          %v311 = vld [vmem:[%s227 + $0xf8] sm:$0xff]
          %v312 = vld [vmem:[%s227 + $0x100] sm:$0xff]
          %v313 = vld [vmem:[%s227 + $0x108] sm:$0xff]
          %v314 = vld [vmem:[%s227 + $0x110] sm:$0xff]
          %v315 = vld [vmem:[%s227 + $0x118] sm:$0xff]
          %v316 = vld [vmem:[%s227 + $0x120] sm:$0xff]
          %v317 = vld [vmem:[%s227 + $0x128] sm:$0xff]
          %v318 = vld [vmem:[%s227 + $0x130] sm:$0xff]
          %v319 = vld [vmem:[%s227 + $0x138] sm:$0xff]
          %v320 = vld [vmem:[%s227 + $0x140] sm:$0xff]
          %v321 = vld [vmem:[%s227 + $0x148] sm:$0xff]
          %v322 = vld [vmem:[%s227 + $0x150] sm:$0xff]
          %v323 = vld [vmem:[%s227 + $0x158] sm:$0xff]
          %v324 = vld [vmem:[%s227 + $0x160] sm:$0xff]
          %v325 = vld [vmem:[%s227 + $0x168] sm:$0xff]
          %v326 = vld [vmem:[%s227 + $0x170] sm:$0xff]
          %v327 = vld [vmem:[%s227 + $0x178] sm:$0xff]
          %v328 = vld [vmem:[%s227 + $0x180] sm:$0xff]
          %v329 = vld [vmem:[%s227 + $0x188] sm:$0xff]
          %v330 = vld [vmem:[%s227 + $0x190] sm:$0xff]
          %v331 = vld [vmem:[%s227 + $0x198] sm:$0xff]
          %v332 = vld [vmem:[%s227 + $0x1a0] sm:$0xff]
          %v333 = vld [vmem:[%s227 + $0x1a8] sm:$0xff]
          %v334 = vld [vmem:[%s227 + $0x1b0] sm:$0xff]
          %v335 = vld [vmem:[%s227 + $0x1b8] sm:$0xff]
          %v336 = vld [vmem:[%s227 + $0x1c0] sm:$0xff]
          %v337 = vld [vmem:[%s227 + $0x1c8] sm:$0xff]
          %v338 = vld [vmem:[%s227 + $0x1d0] sm:$0xff]
          %v339 = vld [vmem:[%s227 + $0x1d8] sm:$0xff]
          %v340 = vld [vmem:[%s227 + $0x1e0] sm:$0xff]
          %v341 = vld [vmem:[%s227 + $0x1e8] sm:$0xff]
          %v342 = vld [vmem:[%s227 + $0x1f0] sm:$0xff]
          %v343 = vld [vmem:[%s227 + $0x1f8] sm:$0xff]
          %v344 = vpack.c.bf16 %v284, %v280
          %v345 = vpack.c.bf16 %v285, %v281
          %v346 = vpack.c.bf16 %v286, %v282
          %v347 = vpack.c.bf16 %v287, %v283
          %v348 = vpack.c.bf16 %v292, %v288
          %v349 = vpack.c.bf16 %v293, %v289
          %v350 = vpack.c.bf16 %v294, %v290
          %v351 = vpack.c.bf16 %v295, %v291
          %v352 = vpack.c.bf16 %v300, %v296
          %v353 = vpack.c.bf16 %v301, %v297
          %v354 = vpack.c.bf16 %v302, %v298
          %v355 = vpack.c.bf16 %v303, %v299
          %v356 = vpack.c.bf16 %v308, %v304
          %v357 = vpack.c.bf16 %v309, %v305
          %v358 = vpack.c.bf16 %v310, %v306
          %v359 = vpack.c.bf16 %v311, %v307
          %v360 = vpack.c.bf16 %v316, %v312
          %v361 = vpack.c.bf16 %v317, %v313
          %v362 = vpack.c.bf16 %v318, %v314
          %v363 = vpack.c.bf16 %v319, %v315
          %v364 = vpack.c.bf16 %v324, %v320
          %v365 = vpack.c.bf16 %v325, %v321
          %v366 = vpack.c.bf16 %v326, %v322
          %v367 = vpack.c.bf16 %v327, %v323
          %v368 = vpack.c.bf16 %v332, %v328
          %v369 = vpack.c.bf16 %v333, %v329
          %v370 = vpack.c.bf16 %v334, %v330
          %v371 = vpack.c.bf16 %v335, %v331
          %v372 = vpack.c.bf16 %v340, %v336
          %v373 = vpack.c.bf16 %v341, %v337
          %v374 = vpack.c.bf16 %v342, %v338
          %v375 = vpack.c.bf16 %v343, %v339
          %v376 = vld [vmem:[%s1] sm:$0xf]
          %v377 = vld [vmem:[%s1 + $0x4] sm:$0xf]
          %v378 = vld [vmem:[%s1 + $0x8] sm:$0xf]
          %v379 = vld [vmem:[%s1 + $0xc] sm:$0xf]
          %v380 = vld [vmem:[%s1 + $0x10] sm:$0xf]
          %v381 = vld [vmem:[%s1 + $0x14] sm:$0xf]
          %v382 = vld [vmem:[%s1 + $0x18] sm:$0xf]
          %v383 = vld [vmem:[%s1 + $0x1c] sm:$0xf]
          %v384 = vld [vmem:[%s1 + $0x20] sm:$0xf]
          %v385 = vld [vmem:[%s1 + $0x24] sm:$0xf]
          %v386 = vld [vmem:[%s1 + $0x28] sm:$0xf]
          %v387 = vld [vmem:[%s1 + $0x2c] sm:$0xf]
          %v388 = vld [vmem:[%s1 + $0x30] sm:$0xf]
          %v389 = vld [vmem:[%s1 + $0x34] sm:$0xf]
          %v390 = vld [vmem:[%s1 + $0x38] sm:$0xf]
          %v391 = vld [vmem:[%s1 + $0x3c] sm:$0xf]
          %v392 = vld [vmem:[%s1 + $0x40] sm:$0xf]
          %v393 = vld [vmem:[%s1 + $0x44] sm:$0xf]
          %v394 = vld [vmem:[%s1 + $0x48] sm:$0xf]
          %v395 = vld [vmem:[%s1 + $0x4c] sm:$0xf]
          %v396 = vld [vmem:[%s1 + $0x50] sm:$0xf]
          %v397 = vld [vmem:[%s1 + $0x54] sm:$0xf]
          %v398 = vld [vmem:[%s1 + $0x58] sm:$0xf]
          %v399 = vld [vmem:[%s1 + $0x5c] sm:$0xf]
          %v400 = vld [vmem:[%s1 + $0x60] sm:$0xf]
          %v401 = vld [vmem:[%s1 + $0x64] sm:$0xf]
          %v402 = vld [vmem:[%s1 + $0x68] sm:$0xf]
          %v403 = vld [vmem:[%s1 + $0x6c] sm:$0xf]
          %v404 = vld [vmem:[%s1 + $0x70] sm:$0xf]
          %v405 = vld [vmem:[%s1 + $0x74] sm:$0xf]
          %v406 = vld [vmem:[%s1 + $0x78] sm:$0xf]
          %v407 = vld [vmem:[%s1 + $0x7c] sm:$0xf]
          %v408 = vld [vmem:[%s1 + $0x80] sm:$0xf]
          %v409 = vld [vmem:[%s1 + $0x84] sm:$0xf]
          %v410 = vld [vmem:[%s1 + $0x88] sm:$0xf]
          %v411 = vld [vmem:[%s1 + $0x8c] sm:$0xf]
          %v412 = vld [vmem:[%s1 + $0x90] sm:$0xf]
          %v413 = vld [vmem:[%s1 + $0x94] sm:$0xf]
          %v414 = vld [vmem:[%s1 + $0x98] sm:$0xf]
          %v415 = vld [vmem:[%s1 + $0x9c] sm:$0xf]
          %v416 = vld [vmem:[%s1 + $0xa0] sm:$0xf]
          %v417 = vld [vmem:[%s1 + $0xa4] sm:$0xf]
          %v418 = vld [vmem:[%s1 + $0xa8] sm:$0xf]
          %v419 = vld [vmem:[%s1 + $0xac] sm:$0xf]
          %v420 = vld [vmem:[%s1 + $0xb0] sm:$0xf]
          %v421 = vld [vmem:[%s1 + $0xb4] sm:$0xf]
          %v422 = vld [vmem:[%s1 + $0xb8] sm:$0xf]
          %v423 = vld [vmem:[%s1 + $0xbc] sm:$0xf]
          %v424 = vld [vmem:[%s1 + $0xc0] sm:$0xf]
          %v425 = vld [vmem:[%s1 + $0xc4] sm:$0xf]
          %v426 = vld [vmem:[%s1 + $0xc8] sm:$0xf]
          %v427 = vld [vmem:[%s1 + $0xcc] sm:$0xf]
          %v428 = vld [vmem:[%s1 + $0xd0] sm:$0xf]
          %v429 = vld [vmem:[%s1 + $0xd4] sm:$0xf]
          %v430 = vld [vmem:[%s1 + $0xd8] sm:$0xf]
          %v431 = vld [vmem:[%s1 + $0xdc] sm:$0xf]
          %v432 = vld [vmem:[%s1 + $0xe0] sm:$0xf]
          %v433 = vld [vmem:[%s1 + $0xe4] sm:$0xf]
          %v434 = vld [vmem:[%s1 + $0xe8] sm:$0xf]
          %v435 = vld [vmem:[%s1 + $0xec] sm:$0xf]
          %v436 = vld [vmem:[%s1 + $0xf0] sm:$0xf]
          %v437 = vld [vmem:[%s1 + $0xf4] sm:$0xf]
          %v438 = vld [vmem:[%s1 + $0xf8] sm:$0xf]
          %v439 = vld [vmem:[%s1 + $0xfc] sm:$0xf]
          %v504 = vunpack.c.l.b16 %v376
          %v505 = vunpack.c.l.b16 %v377
          %v506 = vunpack.c.l.b16 %v378
          %v507 = vunpack.c.l.b16 %v379
          %v508 = vunpack.c.l.b16 %v380
          %v509 = vunpack.c.l.b16 %v381
          %v510 = vunpack.c.l.b16 %v382
          %v511 = vunpack.c.l.b16 %v383
          %v512 = vunpack.c.l.b16 %v384
          %v513 = vunpack.c.l.b16 %v385
          %v514 = vunpack.c.l.b16 %v386
          %v515 = vunpack.c.l.b16 %v387
          %v516 = vunpack.c.l.b16 %v388
          %v517 = vunpack.c.l.b16 %v389
          %v518 = vunpack.c.l.b16 %v390
          %v519 = vunpack.c.l.b16 %v391
          %v520 = vunpack.c.l.b16 %v392
          %v521 = vunpack.c.l.b16 %v393
          %v522 = vunpack.c.l.b16 %v394
          %v523 = vunpack.c.l.b16 %v395
          %v524 = vunpack.c.l.b16 %v396
          %v525 = vunpack.c.l.b16 %v397
          %v526 = vunpack.c.l.b16 %v398
          %v527 = vunpack.c.l.b16 %v399
          %v528 = vunpack.c.l.b16 %v400
          %v529 = vunpack.c.l.b16 %v401
          %v530 = vunpack.c.l.b16 %v402
          %v531 = vunpack.c.l.b16 %v403
          %v532 = vunpack.c.l.b16 %v404
          %v533 = vunpack.c.l.b16 %v405
          %v534 = vunpack.c.l.b16 %v406
          %v535 = vunpack.c.l.b16 %v407
          %v536 = vunpack.c.l.b16 %v408
          %v537 = vunpack.c.l.b16 %v409
          %v538 = vunpack.c.l.b16 %v410
          %v539 = vunpack.c.l.b16 %v411
          %v540 = vunpack.c.l.b16 %v412
          %v541 = vunpack.c.l.b16 %v413
          %v542 = vunpack.c.l.b16 %v414
          %v543 = vunpack.c.l.b16 %v415
          %v544 = vunpack.c.l.b16 %v416
          %v545 = vunpack.c.l.b16 %v417
          %v546 = vunpack.c.l.b16 %v418
          %v547 = vunpack.c.l.b16 %v419
          %v548 = vunpack.c.l.b16 %v420
          %v549 = vunpack.c.l.b16 %v421
          %v550 = vunpack.c.l.b16 %v422
          %v551 = vunpack.c.l.b16 %v423
          %v552 = vunpack.c.l.b16 %v424
          %v553 = vunpack.c.l.b16 %v425
          %v554 = vunpack.c.l.b16 %v426
          %v555 = vunpack.c.l.b16 %v427
          %v556 = vunpack.c.l.b16 %v428
          %v557 = vunpack.c.l.b16 %v429
          %v558 = vunpack.c.l.b16 %v430
          %v559 = vunpack.c.l.b16 %v431
          %v560 = vunpack.c.l.b16 %v432
          %v561 = vunpack.c.l.b16 %v433
          %v562 = vunpack.c.l.b16 %v434
          %v563 = vunpack.c.l.b16 %v435
          %v564 = vunpack.c.l.b16 %v436
          %v565 = vunpack.c.l.b16 %v437
          %v566 = vunpack.c.l.b16 %v438
          %v567 = vunpack.c.l.b16 %v439
          %v568 = vpack.c.b16 %v505, %v504
          %v569 = vpack.c.b16 %v507, %v506
          %v570 = vpack.c.b16 %v509, %v508
          %v571 = vpack.c.b16 %v511, %v510
          %v572 = vpack.c.b16 %v513, %v512
          %v573 = vpack.c.b16 %v515, %v514
          %v574 = vpack.c.b16 %v517, %v516
          %v575 = vpack.c.b16 %v519, %v518
          %v576 = vpack.c.b16 %v521, %v520
          %v577 = vpack.c.b16 %v523, %v522
          %v578 = vpack.c.b16 %v525, %v524
          %v579 = vpack.c.b16 %v527, %v526
          %v580 = vpack.c.b16 %v529, %v528
          %v581 = vpack.c.b16 %v531, %v530
          %v582 = vpack.c.b16 %v533, %v532
          %v583 = vpack.c.b16 %v535, %v534
          %v584 = vpack.c.b16 %v537, %v536
          %v585 = vpack.c.b16 %v539, %v538
          %v586 = vpack.c.b16 %v541, %v540
          %v587 = vpack.c.b16 %v543, %v542
          %v588 = vpack.c.b16 %v545, %v544
          %v589 = vpack.c.b16 %v547, %v546
          %v590 = vpack.c.b16 %v549, %v548
          %v591 = vpack.c.b16 %v551, %v550
          %v592 = vpack.c.b16 %v553, %v552
          %v593 = vpack.c.b16 %v555, %v554
          %v594 = vpack.c.b16 %v557, %v556
          %v595 = vpack.c.b16 %v559, %v558
          %v596 = vpack.c.b16 %v561, %v560
          %v597 = vpack.c.b16 %v563, %v562
          %v598 = vpack.c.b16 %v565, %v564
          %v599 = vpack.c.b16 %v567, %v566
          %632 = vmatprep.subr.bf16.mxu0 0
          %633 = vmatpush1.bf16.msra.mxu0 %v568
          %634 = vmatprep.subr.bf16.mxu0 0
          %635 = vmatpush1.bf16.msra.mxu0 %v569
          %636 = vmatprep.subr.bf16.mxu0 0
          %637 = vmatpush1.bf16.msra.mxu0 %v570
          %638 = vmatprep.subr.bf16.mxu0 0
          %639 = vmatpush1.bf16.msra.mxu0 %v571
          %640 = vmatprep.subr.bf16.mxu0 0
          %641 = vmatpush1.bf16.msra.mxu0 %v572
          %642 = vmatprep.subr.bf16.mxu0 0
          %643 = vmatpush1.bf16.msra.mxu0 %v573
          %644 = vmatprep.subr.bf16.mxu0 0
          %645 = vmatpush1.bf16.msra.mxu0 %v574
          %646 = vmatprep.subr.bf16.mxu0 0
          %647 = vmatpush1.bf16.msra.mxu0 %v575
          %648 = vmatprep.subr.bf16.mxu0 0
          %649 = vmatpush1.bf16.msra.mxu0 %v576
          %650 = vmatprep.subr.bf16.mxu0 0
          %651 = vmatpush1.bf16.msra.mxu0 %v577
          %652 = vmatprep.subr.bf16.mxu0 0
          %653 = vmatpush1.bf16.msra.mxu0 %v578
          %654 = vmatprep.subr.bf16.mxu0 0
          %655 = vmatpush1.bf16.msra.mxu0 %v579
          %656 = vmatprep.subr.bf16.mxu0 0
          %657 = vmatpush1.bf16.msra.mxu0 %v580
          %658 = vmatprep.subr.bf16.mxu0 0
          %659 = vmatpush1.bf16.msra.mxu0 %v581
          %660 = vmatprep.subr.bf16.mxu0 0
          %661 = vmatpush1.bf16.msra.mxu0 %v582
          %662 = vmatprep.subr.bf16.mxu0 0
          %663 = vmatpush1.bf16.msra.mxu0 %v583
          %664 = vmatprep.mubr.bf16.mxu0 %v345
          %665 = vmatmul.mubr.bf16.gmra.mrb[0].mxu0 %v344
          %v666 = vpop.f32.mrb[0].mxu0
          %v667 = vadd.f32 0.0, %v666
          %v668 = vpop.f32.mrb[0].mxu0
          %v669 = vpop.f32.mrb[0].mxu0
          %v670 = vadd.f32 0.0, %v669
          %v671 = vpop.f32.mrb[0].mxu0
          %672 = vmatprep.mubr.bf16.mxu0 %v349
          %673 = vmatmul.mubr.bf16.gmra.mrb[0].mxu0 %v348
          %v674 = vpop.f32.mrb[0].mxu0
          %v675 = vadd.f32 0.0, %v674
          %v676 = vpop.f32.mrb[0].mxu0
          %v677 = vpop.f32.mrb[0].mxu0
          %v678 = vadd.f32 0.0, %v677
          %v679 = vpop.f32.mrb[0].mxu0
          %680 = vmatprep.mubr.bf16.mxu0 %v353
          %681 = vmatmul.mubr.bf16.gmra.mrb[0].mxu0 %v352
          %v682 = vpop.f32.mrb[0].mxu0
          %v683 = vadd.f32 0.0, %v682
          %v684 = vpop.f32.mrb[0].mxu0
          %v685 = vpop.f32.mrb[0].mxu0
          %v686 = vadd.f32 0.0, %v685
          %v687 = vpop.f32.mrb[0].mxu0
          %688 = vmatprep.mubr.bf16.mxu0 %v357
          %689 = vmatmul.mubr.bf16.gmra.mrb[0].mxu0 %v356
          %v690 = vpop.f32.mrb[0].mxu0
          %v691 = vadd.f32 0.0, %v690
          %v692 = vpop.f32.mrb[0].mxu0
          %v693 = vpop.f32.mrb[0].mxu0
          %v694 = vadd.f32 0.0, %v693
          %v695 = vpop.f32.mrb[0].mxu0
          %696 = vmatprep.mubr.bf16.mxu0 %v361
          %697 = vmatmul.mubr.bf16.gmra.mrb[0].mxu0 %v360
          %v698 = vpop.f32.mrb[0].mxu0
          %v699 = vadd.f32 0.0, %v698
          %v700 = vpop.f32.mrb[0].mxu0
          %v701 = vpop.f32.mrb[0].mxu0
          %v702 = vadd.f32 0.0, %v701
          %v703 = vpop.f32.mrb[0].mxu0
          %704 = vmatprep.mubr.bf16.mxu0 %v365
          %705 = vmatmul.mubr.bf16.gmra.mrb[0].mxu0 %v364
          %v706 = vpop.f32.mrb[0].mxu0
          %v707 = vadd.f32 0.0, %v706
          %v708 = vpop.f32.mrb[0].mxu0
          %v709 = vpop.f32.mrb[0].mxu0
          %v710 = vadd.f32 0.0, %v709
          %v711 = vpop.f32.mrb[0].mxu0
          %712 = vmatprep.mubr.bf16.mxu0 %v369
          %713 = vmatmul.mubr.bf16.gmra.mrb[0].mxu0 %v368
          %v714 = vpop.f32.mrb[0].mxu0
          %v715 = vadd.f32 0.0, %v714
          %v716 = vpop.f32.mrb[0].mxu0
          %v717 = vpop.f32.mrb[0].mxu0
          %v718 = vadd.f32 0.0, %v717
          %v719 = vpop.f32.mrb[0].mxu0
          %720 = vmatprep.mubr.bf16.mxu0 %v373
          %721 = vmatmul.mubr.bf16.gmra.mrb[0].mxu0 %v372
          %v722 = vpop.f32.mrb[0].mxu0
          %v723 = vadd.f32 0.0, %v722
          %v724 = vpop.f32.mrb[0].mxu0
          %v725 = vpop.f32.mrb[0].mxu0
          %v726 = vadd.f32 0.0, %v725
          %v727 = vpop.f32.mrb[0].mxu0
          %728 = vdwg.mxu0
          %729 = vmatprep.subr.bf16.mxu0 0
          %730 = vmatpush1.bf16.msra.mxu0 %v584
          %731 = vmatprep.subr.bf16.mxu0 0
          %732 = vmatpush1.bf16.msra.mxu0 %v585
          %733 = vmatprep.subr.bf16.mxu0 0
          %734 = vmatpush1.bf16.msra.mxu0 %v586
          %735 = vmatprep.subr.bf16.mxu0 0
          %736 = vmatpush1.bf16.msra.mxu0 %v587
          %737 = vmatprep.subr.bf16.mxu0 0
          %738 = vmatpush1.bf16.msra.mxu0 %v588
          %739 = vmatprep.subr.bf16.mxu0 0
          %740 = vmatpush1.bf16.msra.mxu0 %v589
          %741 = vmatprep.subr.bf16.mxu0 0
          %742 = vmatpush1.bf16.msra.mxu0 %v590
          %743 = vmatprep.subr.bf16.mxu0 0
          %744 = vmatpush1.bf16.msra.mxu0 %v591
          %745 = vmatprep.subr.bf16.mxu0 0
          %746 = vmatpush1.bf16.msra.mxu0 %v592
          %747 = vmatprep.subr.bf16.mxu0 0
          %748 = vmatpush1.bf16.msra.mxu0 %v593
          %749 = vmatprep.subr.bf16.mxu0 0
          %750 = vmatpush1.bf16.msra.mxu0 %v594
          %751 = vmatprep.subr.bf16.mxu0 0
          %752 = vmatpush1.bf16.msra.mxu0 %v595
          %753 = vmatprep.subr.bf16.mxu0 0
          %754 = vmatpush1.bf16.msra.mxu0 %v596
          %755 = vmatprep.subr.bf16.mxu0 0
          %756 = vmatpush1.bf16.msra.mxu0 %v597
          %757 = vmatprep.subr.bf16.mxu0 0
          %758 = vmatpush1.bf16.msra.mxu0 %v598
          %759 = vmatprep.subr.bf16.mxu0 0
          %760 = vmatpush1.bf16.msra.mxu0 %v599
          %761 = vmatprep.mubr.bf16.mxu0 %v347
          %762 = vmatmul.mubr.bf16.gmra.mrb[0].mxu0 %v346
          %v763 = vpop.f32.mrb[0].mxu0
          %v764 = vadd.f32 %v667, %v763
          %v765 = vpop.f32.mrb[0].mxu0
          %v766 = vpop.f32.mrb[0].mxu0
          %v767 = vadd.f32 %v670, %v766
          %v768 = vpop.f32.mrb[0].mxu0
          %769 = vmatprep.mubr.bf16.mxu0 %v351
          %770 = vmatmul.mubr.bf16.gmra.mrb[0].mxu0 %v350
          %v771 = vpop.f32.mrb[0].mxu0
          %v772 = vadd.f32 %v675, %v771
          %v773 = vpop.f32.mrb[0].mxu0
          %v774 = vpop.f32.mrb[0].mxu0
          %v775 = vadd.f32 %v678, %v774
          %v776 = vpop.f32.mrb[0].mxu0
          %777 = vmatprep.mubr.bf16.mxu0 %v355
          %778 = vmatmul.mubr.bf16.gmra.mrb[0].mxu0 %v354
          %v779 = vpop.f32.mrb[0].mxu0
          %v780 = vadd.f32 %v683, %v779
          %v781 = vpop.f32.mrb[0].mxu0
          %v782 = vpop.f32.mrb[0].mxu0
          %v783 = vadd.f32 %v686, %v782
          %v784 = vpop.f32.mrb[0].mxu0
          %785 = vmatprep.mubr.bf16.mxu0 %v359
          %786 = vmatmul.mubr.bf16.gmra.mrb[0].mxu0 %v358
          %v787 = vpop.f32.mrb[0].mxu0
          %v788 = vadd.f32 %v691, %v787
          %v789 = vpop.f32.mrb[0].mxu0
          %v790 = vpop.f32.mrb[0].mxu0
          %v791 = vadd.f32 %v694, %v790
          %v792 = vpop.f32.mrb[0].mxu0
          %793 = vmatprep.mubr.bf16.mxu0 %v363
          %794 = vmatmul.mubr.bf16.gmra.mrb[0].mxu0 %v362
          %v795 = vpop.f32.mrb[0].mxu0
          %v796 = vadd.f32 %v699, %v795
          %v797 = vpop.f32.mrb[0].mxu0
          %v798 = vpop.f32.mrb[0].mxu0
          %v799 = vadd.f32 %v702, %v798
          %v800 = vpop.f32.mrb[0].mxu0
          %801 = vmatprep.mubr.bf16.mxu0 %v367
          %802 = vmatmul.mubr.bf16.gmra.mrb[0].mxu0 %v366
          %v803 = vpop.f32.mrb[0].mxu0
          %v804 = vadd.f32 %v707, %v803
          %v805 = vpop.f32.mrb[0].mxu0
          %v806 = vpop.f32.mrb[0].mxu0
          %v807 = vadd.f32 %v710, %v806
          %v808 = vpop.f32.mrb[0].mxu0
          %809 = vmatprep.mubr.bf16.mxu0 %v371
          %810 = vmatmul.mubr.bf16.gmra.mrb[0].mxu0 %v370
          %v811 = vpop.f32.mrb[0].mxu0
          %v812 = vadd.f32 %v715, %v811
          %v813 = vpop.f32.mrb[0].mxu0
          %v814 = vpop.f32.mrb[0].mxu0
          %v815 = vadd.f32 %v718, %v814
          %v816 = vpop.f32.mrb[0].mxu0
          %817 = vmatprep.mubr.bf16.mxu0 %v375
          %818 = vmatmul.mubr.bf16.gmra.mrb[0].mxu0 %v374
          %v819 = vpop.f32.mrb[0].mxu0
          %v820 = vadd.f32 %v723, %v819
          %v821 = vpop.f32.mrb[0].mxu0
          %v822 = vpop.f32.mrb[0].mxu0
          %v823 = vadd.f32 %v726, %v822
          %v824 = vpop.f32.mrb[0].mxu0
          %825 = vdwg.mxu0
          %vm826 = vcmask 261120
          %827 = vst.msk [vmem:[#allocation2] sm:$0xff] %vm826, %v764
          %828 = vst.msk [vmem:[#allocation2 + $0x8] sm:$0xff] %vm826, %v767
          %829 = vst.msk [vmem:[#allocation2 + $0x10] sm:$0xff] %vm826, %v772
          %830 = vst.msk [vmem:[#allocation2 + $0x18] sm:$0xff] %vm826, %v775
          %831 = vst.msk [vmem:[#allocation2 + $0x20] sm:$0xff] %vm826, %v780
          %832 = vst.msk [vmem:[#allocation2 + $0x28] sm:$0xff] %vm826, %v783
          %833 = vst.msk [vmem:[#allocation2 + $0x30] sm:$0xff] %vm826, %v788
          %834 = vst.msk [vmem:[#allocation2 + $0x38] sm:$0xff] %vm826, %v791
          %835 = vst.msk [vmem:[#allocation2 + $0x40] sm:$0xff] %vm826, %v796
          %836 = vst.msk [vmem:[#allocation2 + $0x48] sm:$0xff] %vm826, %v799
          %837 = vst.msk [vmem:[#allocation2 + $0x50] sm:$0xff] %vm826, %v804
          %838 = vst.msk [vmem:[#allocation2 + $0x58] sm:$0xff] %vm826, %v807
          %839 = vst.msk [vmem:[#allocation2 + $0x60] sm:$0xff] %vm826, %v812
          %840 = vst.msk [vmem:[#allocation2 + $0x68] sm:$0xff] %vm826, %v815
          %841 = vst.msk [vmem:[#allocation2 + $0x70] sm:$0xff] %vm826, %v820
          %842 = vst.msk [vmem:[#allocation2 + $0x78] sm:$0xff] %vm826, %v823
        $region44: #{tpu_custom_call.1} parent=35 // pred_fallthru
          _
        %v843 = vld [vmem:[#allocation2] sm:$0xff]
        %v844 = vld [vmem:[#allocation2 + $0x8] sm:$0xff]
        %v845 = vld [vmem:[#allocation2 + $0x10] sm:$0xff]
        %v846 = vld [vmem:[#allocation2 + $0x18] sm:$0xff]
        %v847 = vld [vmem:[#allocation2 + $0x20] sm:$0xff]
        %v848 = vld [vmem:[#allocation2 + $0x28] sm:$0xff]
        %v849 = vld [vmem:[#allocation2 + $0x30] sm:$0xff]
        %v850 = vld [vmem:[#allocation2 + $0x38] sm:$0xff]
        %v851 = vld [vmem:[#allocation2 + $0x40] sm:$0xff]
        %v852 = vld [vmem:[#allocation2 + $0x48] sm:$0xff]
        %v853 = vld [vmem:[#allocation2 + $0x50] sm:$0xff]
        %v854 = vld [vmem:[#allocation2 + $0x58] sm:$0xff]
        %v855 = vld [vmem:[#allocation2 + $0x60] sm:$0xff]
        %v856 = vld [vmem:[#allocation2 + $0x68] sm:$0xff]
        %v857 = vld [vmem:[#allocation2 + $0x70] sm:$0xff]
        %v858 = vld [vmem:[#allocation2 + $0x78] sm:$0xff]
        %v859 = vpack.c.bf16 %v844, %v843
        %v860 = vpack.c.bf16 %v846, %v845
        %v861 = vpack.c.bf16 %v848, %v847
        %v862 = vpack.c.bf16 %v850, %v849
        %v863 = vpack.c.bf16 %v852, %v851
        %v864 = vpack.c.bf16 %v854, %v853
        %v865 = vpack.c.bf16 %v856, %v855
        %v866 = vpack.c.bf16 %v858, %v857
        %v867 = vld [vmem:[%s266] sm:$0xff]
        %v868 = vld [vmem:[%s266 + $0x8] sm:$0xff]
        %v869 = vld [vmem:[%s266 + $0x10] sm:$0xff]
        %v870 = vld [vmem:[%s266 + $0x18] sm:$0xff]
        %v871 = vld [vmem:[%s266 + $0x20] sm:$0xff]
        %v872 = vld [vmem:[%s266 + $0x28] sm:$0xff]
        %v873 = vld [vmem:[%s266 + $0x30] sm:$0xff]
        %v874 = vld [vmem:[%s266 + $0x38] sm:$0xff]
        %v875 = vld [vmem:[%s271] sm:$0xf]
        %v877 = vlaneseq
        %v878 = vshrl.u32 %v877, 7
        %v879 = vsub.s32 0, %v878
        %v880 = vrot.slane %v875, %v879
        %v881 = vlaneseq
        %v882 = vshrl.u32 %v881, 7
        %v883 = vsub.s32 1, %v882
        %v884 = vrot.slane %v875, %v883
        %v885 = vlaneseq
        %v886 = vshrl.u32 %v885, 7
        %v887 = vsub.s32 2, %v886
        %v888 = vrot.slane %v875, %v887
        %v889 = vlaneseq
        %v890 = vshrl.u32 %v889, 7
        %v891 = vsub.s32 3, %v890
        %v892 = vrot.slane %v875, %v891
        %v905 = vunpack.c.l.b16 %v867
        %v906 = vunpack.c.h.b16 %v867
        %v907 = vunpack.c.l.b16 %v868
        %v908 = vunpack.c.h.b16 %v868
        %v909 = vunpack.c.l.b16 %v869
        %v910 = vunpack.c.h.b16 %v869
        %v911 = vunpack.c.l.b16 %v870
        %v912 = vunpack.c.h.b16 %v870
        %v913 = vunpack.c.l.b16 %v871
        %v914 = vunpack.c.h.b16 %v871
        %v915 = vunpack.c.l.b16 %v872
        %v916 = vunpack.c.h.b16 %v872
        %v917 = vunpack.c.l.b16 %v873
        %v918 = vunpack.c.h.b16 %v873
        %v919 = vunpack.c.l.b16 %v874
        %v920 = vunpack.c.h.b16 %v874
        %v921 = vpack.c.b16 %v909, %v905
        %v922 = vpack.c.b16 %v910, %v906
        %v923 = vpack.c.b16 %v911, %v907
        %v924 = vpack.c.b16 %v912, %v908
        %v925 = vpack.c.b16 %v917, %v913
        %v926 = vpack.c.b16 %v918, %v914
        %v927 = vpack.c.b16 %v919, %v915
        %v928 = vpack.c.b16 %v920, %v916
        %vm937 = vcmask 261120
        %v939 = vsel %vm937, %v859, 0
        %v942 = vsel %vm937, %v860, 0
        %v945 = vsel %vm937, %v861, 0
        %v948 = vsel %vm937, %v862, 0
        %v951 = vsel %vm937, %v863, 0
        %v954 = vsel %vm937, %v864, 0
        %v957 = vsel %vm937, %v865, 0
        %v960 = vsel %vm937, %v866, 0
        %962 = vmatprep.subr.bf16.mxu0 %v922
        %963 = vmatpush1.bf16.msra.mxu0 %v921
        %964 = vmatprep.subr.bf16.mxu0 %v926
        %965 = vmatpush1.bf16.msra.mxu0 %v925
        %966 = vmatprep.subr.bf16.mxu0 0
        %967 = vmatpush1.bf16.msra.mxu0 0
        %968 = vmatprep.subr.bf16.mxu0 0
        %969 = vmatpush1.bf16.msra.mxu0 0
        %970 = vmatprep.subr.bf16.mxu0 0
        %971 = vmatpush1.bf16.msra.mxu0 0
        %972 = vmatprep.subr.bf16.mxu0 0
        %973 = vmatpush1.bf16.msra.mxu0 0
        %974 = vmatprep.subr.bf16.mxu0 0
        %975 = vmatpush1.bf16.msra.mxu0 0
        %976 = vmatprep.subr.bf16.mxu0 0
        %977 = vmatpush1.bf16.msra.mxu0 0
        %978 = vmatprep.subr.bf16.mxu0 0
        %979 = vmatpush1.bf16.msra.mxu0 0
        %980 = vmatprep.subr.bf16.mxu0 0
        %981 = vmatpush1.bf16.msra.mxu0 0
        %982 = vmatprep.subr.bf16.mxu0 0
        %983 = vmatpush1.bf16.msra.mxu0 0
        %984 = vmatprep.subr.bf16.mxu0 0
        %985 = vmatpush1.bf16.msra.mxu0 0
        %986 = vmatprep.subr.bf16.mxu0 0
        %987 = vmatpush1.bf16.msra.mxu0 0
        %988 = vmatprep.subr.bf16.mxu0 0
        %989 = vmatpush1.bf16.msra.mxu0 0
        %990 = vmatprep.subr.bf16.mxu0 0
        %991 = vmatpush1.bf16.msra.mxu0 0
        %992 = vmatprep.subr.bf16.mxu0 0
        %993 = vmatpush1.bf16.msra.mxu0 0
        %994 = vmatprep.mubr.bf16.mxu0 0
        %995 = vmatmul.mubr.bf16.gmra.mrb[0].mxu0 %v939
        %v996 = vpop.f32.mrb[0].mxu0
        %v997 = vadd.f32 %v880, %v996
        %v998 = vpop.f32.mrb[0].mxu0
        %v999 = vadd.f32 %v884, %v998
        %v1000 = vpop.f32.mrb[0].mxu0
        %v1001 = vadd.f32 %v880, %v1000
        %v1002 = vpop.f32.mrb[0].mxu0
        %v1003 = vadd.f32 %v884, %v1002
        %1004 = vmatprep.mubr.bf16.mxu0 0
        %1005 = vmatmul.mubr.bf16.gmra.mrb[0].mxu0 %v942
        %v1006 = vpop.f32.mrb[0].mxu0
        %v1007 = vadd.f32 %v880, %v1006
        %v1008 = vpop.f32.mrb[0].mxu0
        %v1009 = vadd.f32 %v884, %v1008
        %v1010 = vpop.f32.mrb[0].mxu0
        %v1011 = vadd.f32 %v880, %v1010
        %v1012 = vpop.f32.mrb[0].mxu0
        %v1013 = vadd.f32 %v884, %v1012
        %1014 = vmatprep.mubr.bf16.mxu0 0
        %1015 = vmatmul.mubr.bf16.gmra.mrb[0].mxu0 %v945
        %v1016 = vpop.f32.mrb[0].mxu0
        %v1017 = vadd.f32 %v880, %v1016
        %v1018 = vpop.f32.mrb[0].mxu0
        %v1019 = vadd.f32 %v884, %v1018
        %v1020 = vpop.f32.mrb[0].mxu0
        %v1021 = vadd.f32 %v880, %v1020
        %v1022 = vpop.f32.mrb[0].mxu0
        %v1023 = vadd.f32 %v884, %v1022
        %1024 = vmatprep.mubr.bf16.mxu0 0
        %1025 = vmatmul.mubr.bf16.gmra.mrb[0].mxu0 %v948
        %v1026 = vpop.f32.mrb[0].mxu0
        %v1027 = vadd.f32 %v880, %v1026
        %v1028 = vpop.f32.mrb[0].mxu0
        %v1029 = vadd.f32 %v884, %v1028
        %v1030 = vpop.f32.mrb[0].mxu0
        %v1031 = vadd.f32 %v880, %v1030
        %v1032 = vpop.f32.mrb[0].mxu0
        %v1033 = vadd.f32 %v884, %v1032
        %1034 = vmatprep.mubr.bf16.mxu0 0
        %1035 = vmatmul.mubr.bf16.gmra.mrb[0].mxu0 %v951
        %v1036 = vpop.f32.mrb[0].mxu0
        %v1037 = vadd.f32 %v880, %v1036
        %v1038 = vpop.f32.mrb[0].mxu0
        %v1039 = vadd.f32 %v884, %v1038
        %v1040 = vpop.f32.mrb[0].mxu0
        %v1041 = vadd.f32 %v880, %v1040
        %v1042 = vpop.f32.mrb[0].mxu0
        %v1043 = vadd.f32 %v884, %v1042
        %1044 = vmatprep.mubr.bf16.mxu0 0
        %1045 = vmatmul.mubr.bf16.gmra.mrb[0].mxu0 %v954
        %v1046 = vpop.f32.mrb[0].mxu0
        %v1047 = vadd.f32 %v880, %v1046
        %v1048 = vpop.f32.mrb[0].mxu0
        %v1049 = vadd.f32 %v884, %v1048
        %v1050 = vpop.f32.mrb[0].mxu0
        %v1051 = vadd.f32 %v880, %v1050
        %v1052 = vpop.f32.mrb[0].mxu0
        %v1053 = vadd.f32 %v884, %v1052
        %1054 = vmatprep.mubr.bf16.mxu0 0
        %1055 = vmatmul.mubr.bf16.gmra.mrb[0].mxu0 %v957
        %v1056 = vpop.f32.mrb[0].mxu0
        %v1057 = vadd.f32 %v880, %v1056
        %v1058 = vpop.f32.mrb[0].mxu0
        %v1059 = vadd.f32 %v884, %v1058
        %v1060 = vpop.f32.mrb[0].mxu0
        %v1061 = vadd.f32 %v880, %v1060
        %v1062 = vpop.f32.mrb[0].mxu0
        %v1063 = vadd.f32 %v884, %v1062
        %1064 = vmatprep.mubr.bf16.mxu0 0
        %1065 = vmatmul.mubr.bf16.gmra.mrb[0].mxu0 %v960
        %v1066 = vpop.f32.mrb[0].mxu0
        %v1067 = vadd.f32 %v880, %v1066
        %v1068 = vpop.f32.mrb[0].mxu0
        %v1069 = vadd.f32 %v884, %v1068
        %v1070 = vpop.f32.mrb[0].mxu0
        %v1071 = vadd.f32 %v880, %v1070
        %v1072 = vpop.f32.mrb[0].mxu0
        %v1073 = vadd.f32 %v884, %v1072
        %1074 = vdwg.mxu0
        %1075 = vmatprep.subr.bf16.mxu0 %v924
        %1076 = vmatpush1.bf16.msra.mxu0 %v923
        %1077 = vmatprep.subr.bf16.mxu0 %v928
        %1078 = vmatpush1.bf16.msra.mxu0 %v927
        %1079 = vmatprep.subr.bf16.mxu0 0
        %1080 = vmatpush1.bf16.msra.mxu0 0
        %1081 = vmatprep.subr.bf16.mxu0 0
        %1082 = vmatpush1.bf16.msra.mxu0 0
        %1083 = vmatprep.subr.bf16.mxu0 0
        %1084 = vmatpush1.bf16.msra.mxu0 0
        %1085 = vmatprep.subr.bf16.mxu0 0
        %1086 = vmatpush1.bf16.msra.mxu0 0
        %1087 = vmatprep.subr.bf16.mxu0 0
        %1088 = vmatpush1.bf16.msra.mxu0 0
        %1089 = vmatprep.subr.bf16.mxu0 0
        %1090 = vmatpush1.bf16.msra.mxu0 0
        %1091 = vmatprep.subr.bf16.mxu0 0
        %1092 = vmatpush1.bf16.msra.mxu0 0
        %1093 = vmatprep.subr.bf16.mxu0 0
        %1094 = vmatpush1.bf16.msra.mxu0 0
        %1095 = vmatprep.subr.bf16.mxu0 0
        %1096 = vmatpush1.bf16.msra.mxu0 0
        %1097 = vmatprep.subr.bf16.mxu0 0
        %1098 = vmatpush1.bf16.msra.mxu0 0
        %1099 = vmatprep.subr.bf16.mxu0 0
        %1100 = vmatpush1.bf16.msra.mxu0 0
        %1101 = vmatprep.subr.bf16.mxu0 0
        %1102 = vmatpush1.bf16.msra.mxu0 0
        %1103 = vmatprep.subr.bf16.mxu0 0
        %1104 = vmatpush1.bf16.msra.mxu0 0
        %1105 = vmatprep.subr.bf16.mxu0 0
        %1106 = vmatpush1.bf16.msra.mxu0 0
        %1107 = vmatprep.mubr.bf16.mxu0 0
        %1108 = vmatmul.mubr.bf16.gmra.mrb[0].mxu0 %v939
        %v1109 = vpop.f32.mrb[0].mxu0
        %v1110 = vadd.f32 %v888, %v1109
        %v1111 = vpop.f32.mrb[0].mxu0
        %v1112 = vadd.f32 %v892, %v1111
        %v1113 = vpop.f32.mrb[0].mxu0
        %v1114 = vadd.f32 %v888, %v1113
        %v1115 = vpop.f32.mrb[0].mxu0
        %v1116 = vadd.f32 %v892, %v1115
        %1117 = vmatprep.mubr.bf16.mxu0 0
        %1118 = vmatmul.mubr.bf16.gmra.mrb[0].mxu0 %v942
        %v1119 = vpop.f32.mrb[0].mxu0
        %v1120 = vadd.f32 %v888, %v1119
        %v1121 = vpop.f32.mrb[0].mxu0
        %v1122 = vadd.f32 %v892, %v1121
        %v1123 = vpop.f32.mrb[0].mxu0
        %v1124 = vadd.f32 %v888, %v1123
        %v1125 = vpop.f32.mrb[0].mxu0
        %v1126 = vadd.f32 %v892, %v1125
        %1127 = vmatprep.mubr.bf16.mxu0 0
        %1128 = vmatmul.mubr.bf16.gmra.mrb[0].mxu0 %v945
        %v1129 = vpop.f32.mrb[0].mxu0
        %v1130 = vadd.f32 %v888, %v1129
        %v1131 = vpop.f32.mrb[0].mxu0
        %v1132 = vadd.f32 %v892, %v1131
        %v1133 = vpop.f32.mrb[0].mxu0
        %v1134 = vadd.f32 %v888, %v1133
        %v1135 = vpop.f32.mrb[0].mxu0
        %v1136 = vadd.f32 %v892, %v1135
        %1137 = vmatprep.mubr.bf16.mxu0 0
        %1138 = vmatmul.mubr.bf16.gmra.mrb[0].mxu0 %v948
        %v1139 = vpop.f32.mrb[0].mxu0
        %v1140 = vadd.f32 %v888, %v1139
        %v1141 = vpop.f32.mrb[0].mxu0
        %v1142 = vadd.f32 %v892, %v1141
        %v1143 = vpop.f32.mrb[0].mxu0
        %v1144 = vadd.f32 %v888, %v1143
        %v1145 = vpop.f32.mrb[0].mxu0
        %v1146 = vadd.f32 %v892, %v1145
        %1147 = vmatprep.mubr.bf16.mxu0 0
        %1148 = vmatmul.mubr.bf16.gmra.mrb[0].mxu0 %v951
        %v1149 = vpop.f32.mrb[0].mxu0
        %v1150 = vadd.f32 %v888, %v1149
        %v1151 = vpop.f32.mrb[0].mxu0
        %v1152 = vadd.f32 %v892, %v1151
        %v1153 = vpop.f32.mrb[0].mxu0
        %v1154 = vadd.f32 %v888, %v1153
        %v1155 = vpop.f32.mrb[0].mxu0
        %v1156 = vadd.f32 %v892, %v1155
        %1157 = vmatprep.mubr.bf16.mxu0 0
        %1158 = vmatmul.mubr.bf16.gmra.mrb[0].mxu0 %v954
        %v1159 = vpop.f32.mrb[0].mxu0
        %v1160 = vadd.f32 %v888, %v1159
        %v1161 = vpop.f32.mrb[0].mxu0
        %v1162 = vadd.f32 %v892, %v1161
        %v1163 = vpop.f32.mrb[0].mxu0
        %v1164 = vadd.f32 %v888, %v1163
        %v1165 = vpop.f32.mrb[0].mxu0
        %v1166 = vadd.f32 %v892, %v1165
        %1167 = vmatprep.mubr.bf16.mxu0 0
        %1168 = vmatmul.mubr.bf16.gmra.mrb[0].mxu0 %v957
        %v1169 = vpop.f32.mrb[0].mxu0
        %v1170 = vadd.f32 %v888, %v1169
        %v1171 = vpop.f32.mrb[0].mxu0
        %v1172 = vadd.f32 %v892, %v1171
        %v1173 = vpop.f32.mrb[0].mxu0
        %v1174 = vadd.f32 %v888, %v1173
        %v1175 = vpop.f32.mrb[0].mxu0
        %v1176 = vadd.f32 %v892, %v1175
        %1177 = vmatprep.mubr.bf16.mxu0 0
        %1178 = vmatmul.mubr.bf16.gmra.mrb[0].mxu0 %v960
        %v1179 = vpop.f32.mrb[0].mxu0
        %v1180 = vadd.f32 %v888, %v1179
        %v1181 = vpop.f32.mrb[0].mxu0
        %v1182 = vadd.f32 %v892, %v1181
        %v1183 = vpop.f32.mrb[0].mxu0
        %v1184 = vadd.f32 %v888, %v1183
        %v1185 = vpop.f32.mrb[0].mxu0
        %v1186 = vadd.f32 %v892, %v1185
        %1187 = vdwg.mxu0
        %1188 = vst [vmem:[%s260] sm:$0xff] %v997
        %1189 = vst [vmem:[%s260 + $0x8] sm:$0xff] %v999
        %1190 = vst [vmem:[%s260 + $0x10] sm:$0xff] %v1110
        %1191 = vst [vmem:[%s260 + $0x18] sm:$0xff] %v1112
        %1192 = vst [vmem:[%s260 + $0x20] sm:$0xff] %v1001
        %1193 = vst [vmem:[%s260 + $0x28] sm:$0xff] %v1003
        %1194 = vst [vmem:[%s260 + $0x30] sm:$0xff] %v1114
        %1195 = vst [vmem:[%s260 + $0x38] sm:$0xff] %v1116
        %1196 = vst [vmem:[%s260 + $0x40] sm:$0xff] %v1007
        %1197 = vst [vmem:[%s260 + $0x48] sm:$0xff] %v1009
        %1198 = vst [vmem:[%s260 + $0x50] sm:$0xff] %v1120
        %1199 = vst [vmem:[%s260 + $0x58] sm:$0xff] %v1122
        %1200 = vst [vmem:[%s260 + $0x60] sm:$0xff] %v1011
        %1201 = vst [vmem:[%s260 + $0x68] sm:$0xff] %v1013
        %1202 = vst [vmem:[%s260 + $0x70] sm:$0xff] %v1124
        %1203 = vst [vmem:[%s260 + $0x78] sm:$0xff] %v1126
        %1204 = vst [vmem:[%s260 + $0x80] sm:$0xff] %v1017
        %1205 = vst [vmem:[%s260 + $0x88] sm:$0xff] %v1019
        %1206 = vst [vmem:[%s260 + $0x90] sm:$0xff] %v1130
        %1207 = vst [vmem:[%s260 + $0x98] sm:$0xff] %v1132
        %1208 = vst [vmem:[%s260 + $0xa0] sm:$0xff] %v1021
        %1209 = vst [vmem:[%s260 + $0xa8] sm:$0xff] %v1023
        %1210 = vst [vmem:[%s260 + $0xb0] sm:$0xff] %v1134
        %1211 = vst [vmem:[%s260 + $0xb8] sm:$0xff] %v1136
        %1212 = vst [vmem:[%s260 + $0xc0] sm:$0xff] %v1027
        %1213 = vst [vmem:[%s260 + $0xc8] sm:$0xff] %v1029
        %1214 = vst [vmem:[%s260 + $0xd0] sm:$0xff] %v1140
        %1215 = vst [vmem:[%s260 + $0xd8] sm:$0xff] %v1142
        %1216 = vst [vmem:[%s260 + $0xe0] sm:$0xff] %v1031
        %1217 = vst [vmem:[%s260 + $0xe8] sm:$0xff] %v1033
        %1218 = vst [vmem:[%s260 + $0xf0] sm:$0xff] %v1144
        %1219 = vst [vmem:[%s260 + $0xf8] sm:$0xff] %v1146
        %1220 = vst [vmem:[%s260 + $0x100] sm:$0xff] %v1037
        %1221 = vst [vmem:[%s260 + $0x108] sm:$0xff] %v1039
        %1222 = vst [vmem:[%s260 + $0x110] sm:$0xff] %v1150
        %1223 = vst [vmem:[%s260 + $0x118] sm:$0xff] %v1152
        %1224 = vst [vmem:[%s260 + $0x120] sm:$0xff] %v1041
        %1225 = vst [vmem:[%s260 + $0x128] sm:$0xff] %v1043
        %1226 = vst [vmem:[%s260 + $0x130] sm:$0xff] %v1154
        %1227 = vst [vmem:[%s260 + $0x138] sm:$0xff] %v1156
        %1228 = vst [vmem:[%s260 + $0x140] sm:$0xff] %v1047
        %1229 = vst [vmem:[%s260 + $0x148] sm:$0xff] %v1049
        %1230 = vst [vmem:[%s260 + $0x150] sm:$0xff] %v1160
        %1231 = vst [vmem:[%s260 + $0x158] sm:$0xff] %v1162
        %1232 = vst [vmem:[%s260 + $0x160] sm:$0xff] %v1051
        %1233 = vst [vmem:[%s260 + $0x168] sm:$0xff] %v1053
        %1234 = vst [vmem:[%s260 + $0x170] sm:$0xff] %v1164
        %1235 = vst [vmem:[%s260 + $0x178] sm:$0xff] %v1166
        %1236 = vst [vmem:[%s260 + $0x180] sm:$0xff] %v1057
        %1237 = vst [vmem:[%s260 + $0x188] sm:$0xff] %v1059
        %1238 = vst [vmem:[%s260 + $0x190] sm:$0xff] %v1170
        %1239 = vst [vmem:[%s260 + $0x198] sm:$0xff] %v1172
        %1240 = vst [vmem:[%s260 + $0x1a0] sm:$0xff] %v1061
        %1241 = vst [vmem:[%s260 + $0x1a8] sm:$0xff] %v1063
        %1242 = vst [vmem:[%s260 + $0x1b0] sm:$0xff] %v1174
        %1243 = vst [vmem:[%s260 + $0x1b8] sm:$0xff] %v1176
        %1244 = vst [vmem:[%s260 + $0x1c0] sm:$0xff] %v1067
        %1245 = vst [vmem:[%s260 + $0x1c8] sm:$0xff] %v1069
        %1246 = vst [vmem:[%s260 + $0x1d0] sm:$0xff] %v1180
        %1247 = vst [vmem:[%s260 + $0x1d8] sm:$0xff] %v1182
        %1248 = vst [vmem:[%s260 + $0x1e0] sm:$0xff] %v1071
        %1249 = vst [vmem:[%s260 + $0x1e8] sm:$0xff] %v1073
        %1250 = vst [vmem:[%s260 + $0x1f0] sm:$0xff] %v1184
        %1251 = vst [vmem:[%s260 + $0x1f8] sm:$0xff] %v1186
        %s1252 = sand.u32 %s142, 1
        %s1253 = scalar_lea.sflag [#allocation5], %s1252
        %s1254 = sand.u32 %s142, 1
        %s1255 = smul.addr %s1254, 512
        %s1256 = scalar_lea.vmem [#allocation6], %s1255
        // Predicated region
        $region45: #{tpu_custom_call.1} parent=35 // pred_check
          %p1257 = pneg %p152
        $region46: #{tpu_custom_call.1} parent=35 // pred_check_branch
          %1259 = sbr.rel (%p1257) target = $region48
        $region47: #{tpu_custom_call.1} parent=35 // pred_region
          %s1260 = smul.u32 16, %s25
          %s1261 = smul.u32 4, %s26
          %s1263 = ssub.s32 8192, 8192
          %1264 = vsyncadd %s1253, %s1263
          %s1265 = smul.addr %s1260, 4
          %s1266 = sadd.s32 %s1261, %s1265
          %s1267 = smul.addr %s1266, 128
          %s1268 = scalar_lea.hbm %s4, %s1267
          %s1269 = sshll.u32 %s1256, 4
          %s1270 = int_to_ptr.vmem [resolvable:$true] %s1269
          %1275 = dma.vmem_to_hbm [thread:$0]  %s1270, 8192, %s1268, %s1253, 512, 512, 32
        $region48: #{tpu_custom_call.1} parent=35 // pred_fallthru
          _
      $region36: #{tpu_custom_call.1} parent=5 // pred_fallthru
        _
      %p1276 = scmp.le.s32.totalorder 2, %s16
      // Predicated region
      $region49: #{tpu_custom_call.1} parent=5 // pred_check
        %p1277 = pneg %p1276
      $region50: #{tpu_custom_call.1} parent=5 // pred_check_branch
        %1279 = sbr.rel (%p1277) target = $region52
      $region51: #{tpu_custom_call.1} parent=5 // pred_region
        %s1280 = ssub.s32 %s16, 2
        // Predicated region
        $region53: #{tpu_custom_call.1} parent=51 // pred_check
          %p1281 = pneg %p158
        $region54: #{tpu_custom_call.1} parent=51 // pred_check_branch
          %1283 = sbr.rel (%p1281) target = $region56
        $region55: #{tpu_custom_call.1} parent=51 // pred_region
          %s1284 = sand.u32 %s143, 1
          %s1285 = scalar_lea.sflag [#allocation5], %s1284
          %s1286 = sand.u32 %s143, 1
          %s1287 = smul.addr %s1286, 512
          %s1288 = scalar_lea.vmem [#allocation6], %s1287
          %1289 = dma.done %s1285, 8192
        $region56: #{tpu_custom_call.1} parent=51 // pred_fallthru
          _
      $region52: #{tpu_custom_call.1} parent=5 // pred_fallthru
        _
    $region6: #{tpu_custom_call.1} parent=1 // loop_footer
      %s20 = sadd.s32 1, %s16
    $region7: #{tpu_custom_call.1} parent=1 // loop_footer_branch
      %15 = sbr.rel target = $region3
    $region8: #{tpu_custom_call.1} parent=1 // loop_exit
      _
    %1290 = vsyncpa [#allocation4], 1
    %s1291 = scalar_lea.sflag [#allocation4], 1
    %1292 = vsyncpa %s1291, 1
    %1293 = vsyncpa [#allocation5], 1
    %s1294 = scalar_lea.sflag [#allocation5], 1
    %1295 = vsyncpa %s1294, 1

</llo_original>
